<compile_context>
chip_gen: v6e
topology: v6e:2x2x1
jax: 0.10.0
libtpu: 0.0.40
codegen_flags: <defaults>
</compile_context>

<pallas_src>
import jax
import jax.numpy as jnp
from jax.experimental import pallas as pl
from jax.experimental.pallas import tpu as pltpu

_LANE = 128
_SUBLANE = 8
_TB_MAX_DEFAULT = 256
_TK_MAX_DEFAULT = 4096
# Max bytes for the (double-buffered) resident bf16 W block in VMEM.
_W_RESIDENT_MAX_BYTES = 24 * 1024 * 1024
_VMEM_CAP_BYTES = 48 * 1024 * 1024     # safe on v7x (64 MiB) and v5e/v6e (128 MiB)


def _round_up(x, m):
    return (x + m - 1) // m * m


def _pick_tile(dim, max_tile, align):
    """Pick (tile, padded_dim) with tile dividing padded_dim.

    If dim <= max_tile the whole dim is one full-extent block (Pallas waives
    the 8/128 alignment rule for full-extent blocks), so no pad copy is needed.
    """
    if dim <= max_tile:
        return dim, dim
    dim_pad = _round_up(dim, align)
    tile = (max_tile // align) * align
    while dim_pad % tile:
        tile -= align
    return tile, dim_pad


def _make_logreg_kernel(tk, w_resident):
    """Grid = (batch tiles, K tiles); k (reduction) innermost, "arbitrary".

    x_ref: [TB, TK] f32 (cast to bf16 in-kernel),
    w_ref: [Dpad, 128] bf16 (resident) or [TK, 128] bf16 (tiled),
    b_ref: [1, 128] f32, o_ref: [TB, 128] f32 (doubles as the accumulator).
    """

    def kernel(x_ref, w_ref, b_ref, o_ref):
        k = pl.program_id(1)

        if w_resident:
            # Whole W pinned in VMEM (DMA'd once); slice the current K chunk.
            start = pl.multiple_of(k * tk, _LANE)
            w_blk = w_ref[pl.ds(start, tk), :]
        else:
            w_blk = w_ref[...]

        # In-kernel bf16 cast of the f32 x tile (free VPU work), MXU dot with
        # f32 accumulation.
        partial = jnp.dot(x_ref[...].astype(jnp.bfloat16), w_blk,
                          preferred_element_type=jnp.float32)

        @pl.when(k == 0)
        def _init():
            o_ref[...] = partial

        @pl.when(k > 0)
        def _accum():
            o_ref[...] += partial

        @pl.when(k == pl.num_programs(1) - 1)
        def _finalize():
            z = o_ref[...] + b_ref[...]        # f32 bias add (broadcast)
            # Numerically stable sigmoid: exp argument <= 0, never overflows.
            e = jnp.exp(-jnp.abs(z))
            inv = 1.0 / (1.0 + e)
            o_ref[...] = jnp.where(z >= 0.0, inv, e * inv)

    return kernel


def logreg_forward(x_nchw, w, b, *, tb_max=_TB_MAX_DEFAULT, tk_max=_TK_MAX_DEFAULT):
    """x_nchw: [B, C, H, W] f32; w: [D, N] f32; b: [N] f32 with D = C*H*W."""
    batch = x_nchw.shape[0]
    d = x_nchw.shape[1] * x_nchw.shape[2] * x_nchw.shape[3]
    n = w.shape[1]

    # Flatten NCHW row-major over (C, H, W): matches torch.flatten / x.view.
    x_flat = x_nchw.reshape(batch, d)

    # Keep N padded to exactly one lane group (128): lane-dense stores, and
    # the MXU is nowhere near saturation so wider padding only wastes HBM.
    npad = _round_up(n, _LANE)

    tb, bpad = _pick_tile(batch, tb_max, _SUBLANE)
    # v7x megacore: prefer >= 2 batch tiles on the "parallel" axis when it is
    # free to do so (both halves stay sublane-aligned, no padding added).
    if bpad == tb and tb >= 16 and tb % 16 == 0:
        tb //= 2

    tk, dpad = _pick_tile(d, tk_max, _LANE)

    n_b_tiles = bpad // tb
    n_k_tiles = dpad // tk

    # Pin the whole W in VMEM only when it actually saves HBM traffic
    # (multiple batch tiles AND multiple K tiles) and it fits comfortably
    # (keeps v7x's 64 MiB VMEM budget safe); otherwise stream K tiles of W.
    w_resident = (n_b_tiles > 1 and n_k_tiles > 1
                  and 2 * dpad * npad * 2 <= _W_RESIDENT_MAX_BYTES)

    # x stays f32 and unpadded whenever the tiles divide its true shape
    # (avoids a full extra HBM read+write pass over x in the wrapper).
    if bpad != batch or dpad != d:
        x_flat = jnp.pad(x_flat, ((0, bpad - batch), (0, dpad - d)))

    # W is small relative to x: one-time pad + bf16 cast (halves its HBM/VMEM).
    w_p = jnp.pad(w, ((0, dpad - d), (0, npad - n))).astype(jnp.bfloat16)
    bias_p = jnp.pad(b, (0, npad - n)).reshape(1, npad).astype(jnp.float32)

    if w_resident:
        w_spec = pl.BlockSpec((dpad, npad), lambda i, k: (0, 0))   # DMA'd once
    else:
        w_spec = pl.BlockSpec((tk, npad), lambda i, k: (k, 0))

    # Real double-buffered VMEM footprint; cap keeps every generation happy.
    w_vmem = (2 * dpad * npad * 2) if w_resident else (2 * tk * npad * 2)
    footprint = (2 * tb * tk * 4          # x tiles, f32, double-buffered
                 + w_vmem                 # W, bf16
                 + 2 * npad * 4           # bias, f32
                 + 2 * tb * npad * 4)     # output tiles (accumulator), f32
    vmem_limit = int(min(_VMEM_CAP_BYTES,
                         max(4 * 1024 * 1024, footprint + footprint // 4 + (1 << 20))))

    # W is fetched once unless it is K-tiled with several batch tiles.
    w_streams = 1 if (w_resident or n_k_tiles == 1 or n_b_tiles == 1) else n_b_tiles
    cost = pl.CostEstimate(
        flops=2 * bpad * dpad * npad,
        transcendentals=bpad * npad,
        bytes_accessed=(bpad * dpad * 4            # x, f32, read once
                        + w_streams * dpad * npad * 2
                        + npad * 4
                        + bpad * npad * 4),
    )

    out_padded = pl.pallas_call(
        _make_logreg_kernel(tk, w_resident),
        out_shape=jax.ShapeDtypeStruct((bpad, npad), jnp.float32),
        grid_spec=pltpu.PrefetchScalarGridSpec(
            num_scalar_prefetch=0,
            grid=(n_b_tiles, n_k_tiles),
            in_specs=[
                pl.BlockSpec((tb, tk), lambda i, k: (i, k)),     # x tile (f32)
                w_spec,                                          # W (bf16)
                pl.BlockSpec((1, npad), lambda i, k: (0, 0)),    # bias (pinned)
            ],
            out_specs=pl.BlockSpec((tb, npad), lambda i, k: (i, 0)),
        ),
        compiler_params=pltpu.CompilerParams(
            dimension_semantics=("parallel", "arbitrary"),
            vmem_limit_bytes=vmem_limit,
        ),
        cost_estimate=cost,
    )(x_flat, w_p, bias_p)

    # Strip batch / class padding (zeros) outside the kernel.
    return out_padded[:batch, :n]


def _mixed_precision_ref(x, w, b):
    """Reference with matching precision (bf16 operands, f32 accumulation)."""
    bsz = x.shape[0]
    x_flat = x.reshape(bsz, -1)
    z = jnp.dot(x_flat.astype(jnp.bfloat16), w.astype(jnp.bfloat16),
                preferred_element_type=jnp.float32) + b
    return jax.nn.sigmoid(z)


if __name__ == "__main__":
    fwd = jax.jit(logreg_forward, static_argnames=("tb_max", "tk_max"))
    key = jax.random.PRNGKey(0)

    # --- Test 1: small NCHW shapes (B=8, C=4, 16x16, 10 classes; D=1024). ---
    B, C, H, W = 8, 4, 16, 16
    D, NUM_CLASSES = C * H * W, 10
    kx, kw, kb, key = *jax.random.split(key, 3), jax.random.fold_in(key, 7)
    x = jax.random.normal(kx, (B, C, H, W), dtype=jnp.float32)
    w = jax.random.normal(kw, (D, NUM_CLASSES), dtype=jnp.float32) * 0.05
    b = jax.random.normal(kb, (NUM_CLASSES,), dtype=jnp.float32) * 0.05

    y_hat = jax.block_until_ready(fwd(x, w, b))
    assert y_hat.shape == (B, NUM_CLASSES)
    assert jnp.allclose(y_hat, _mixed_precision_ref(x, w, b), atol=1e-4, rtol=1e-4)
    # Looser sanity check against the pure-f32 reference.
    ref_f32 = jax.nn.sigmoid(x.reshape(B, D) @ w + b)
    assert jnp.allclose(y_hat, ref_f32, atol=5e-3, rtol=5e-3)

    # --- Test 2: exercises multi-tile grid, K padding, the resident-W path
    #     and the 2-batch-tile (megacore) split: B=48, C=3, 20x20 (D=1200). ---
    B2, C2, H2, W2 = 48, 3, 20, 20
    D2, N2 = C2 * H2 * W2, 10
    kx2, kw2, kb2 = jax.random.split(key, 3)
    x2 = jax.random.normal(kx2, (B2, C2, H2, W2), dtype=jnp.float32)
    w2 = jax.random.normal(kw2, (D2, N2), dtype=jnp.float32) * 0.05
    b2 = jax.random.normal(kb2, (N2,), dtype=jnp.float32) * 0.05

    y2 = jax.block_until_ready(fwd(x2, w2, b2, tb_max=256, tk_max=512))
    assert y2.shape == (B2, N2)
    assert jnp.allclose(y2, _mixed_precision_ref(x2, w2, b2), atol=1e-4, rtol=1e-4)

    print("KERNEL_OK")
</pallas_src>

<mosaic_0001>
module attributes {stable_mosaic.version = 11 : i64} {
  func.func @kernel(%arg0: i32, %arg1: i32, %arg2: memref<8x1024xf32, #tpu.memory_space<vmem>>, %arg3: memref<1024x128xbf16, #tpu.memory_space<vmem>>, %arg4: memref<1x128xf32, #tpu.memory_space<vmem>>, %arg5: memref<8x128xf32, #tpu.memory_space<vmem>>) attributes {dimension_semantics = [#tpu.dimension_semantics<parallel>, #tpu.dimension_semantics<arbitrary>], iteration_bounds = array<i64: 1, 1>, scalar_prefetch = 0 : i64, scratch_operands = 0 : i64, tpu.core_type = #tpu.core_type<tc>, window_params = [{transform_indices = @transform_0, window_bounds = array<i64: 8, 1024>}, {transform_indices = @transform_1, window_bounds = array<i64: 1024, 128>}, {pipeline_mode = #tpu.pipeline_mode<synchronous>, transform_indices = @transform_2, window_bounds = array<i64: 1, 128>}, {transform_indices = @transform_3, window_bounds = array<i64: 8, 128>}]} {
    %c0 = arith.constant 0 : index
    %c0_0 = arith.constant 0 : index
    %0 = vector.load %arg3[%c0, %c0_0] : memref<1024x128xbf16, #tpu.memory_space<vmem>>, vector<1024x128xbf16>
    %c0_1 = arith.constant 0 : index
    %c0_2 = arith.constant 0 : index
    %1 = vector.load %arg2[%c0_1, %c0_2] : memref<8x1024xf32, #tpu.memory_space<vmem>>, vector<8x1024xf32>
    %2 = arith.truncf %1 : vector<8x1024xf32> to vector<8x1024xbf16>
    %cst = arith.constant dense<0.000000e+00> : vector<8x128xf32>
    %3 = tpu.matmul %2, %0, %cst {dimension_numbers = #tpu.dot_dimension_numbers<[1], [0], [0], [1], [0, 0, 1, 1], [], []>} : vector<8x1024xbf16>, vector<1024x128xbf16>, vector<8x128xf32> -> vector<8x128xf32>
    %c0_i32 = arith.constant 0 : i32
    %4 = arith.cmpi eq, %arg1, %c0_i32 : i32
    %5 = arith.extui %4 : i1 to i32
    %c0_i32_3 = arith.constant 0 : i32
    %6 = arith.cmpi ne, %5, %c0_i32_3 : i32
    scf.if %6 {
      %c0_8 = arith.constant 0 : index
      %c0_9 = arith.constant 0 : index
      %13 = vector.load %arg5[%c0_8, %c0_9] : memref<8x128xf32, #tpu.memory_space<vmem>>, vector<8x128xf32>
      tpu.vector_store %arg5[%c0_8, %c0_9], %3 {strides = array<i32>} : memref<8x128xf32, #tpu.memory_space<vmem>>, vector<8x128xf32>,
    } else {
    }
    %c0_i32_4 = arith.constant 0 : i32
    %7 = arith.cmpi sgt, %arg1, %c0_i32_4 : i32
    %8 = arith.extui %7 : i1 to i32
    %c0_i32_5 = arith.constant 0 : i32
    %9 = arith.cmpi ne, %8, %c0_i32_5 : i32
    scf.if %9 {
      %c0_8 = arith.constant 0 : index
      %c0_9 = arith.constant 0 : index
      %13 = vector.load %arg5[%c0_8, %c0_9] : memref<8x128xf32, #tpu.memory_space<vmem>>, vector<8x128xf32>
      %14 = arith.addf %13, %3 : vector<8x128xf32>
      %c0_10 = arith.constant 0 : index
      %c0_11 = arith.constant 0 : index
      %15 = vector.load %arg5[%c0_10, %c0_11] : memref<8x128xf32, #tpu.memory_space<vmem>>, vector<8x128xf32>
      tpu.vector_store %arg5[%c0_10, %c0_11], %14 {strides = array<i32>} : memref<8x128xf32, #tpu.memory_space<vmem>>, vector<8x128xf32>,
    } else {
    }
    %c0_i32_6 = arith.constant 0 : i32
    %10 = arith.cmpi eq, %arg1, %c0_i32_6 : i32
    %11 = arith.extui %10 : i1 to i32
    %c0_i32_7 = arith.constant 0 : i32
    %12 = arith.cmpi ne, %11, %c0_i32_7 : i32
    scf.if %12 {
      %c0_8 = arith.constant 0 : index
      %c0_9 = arith.constant 0 : index
      %13 = vector.load %arg5[%c0_8, %c0_9] : memref<8x128xf32, #tpu.memory_space<vmem>>, vector<8x128xf32>
      %c0_10 = arith.constant 0 : index
      %c0_11 = arith.constant 0 : index
      %14 = vector.load %arg4[%c0_10, %c0_11] : memref<1x128xf32, #tpu.memory_space<vmem>>, vector<1x128xf32>
      %15 = vector.broadcast %14 : vector<1x128xf32> to vector<8x128xf32>
      %16 = arith.addf %13, %15 : vector<8x128xf32>
      %17 = math.absf %16 : vector<8x128xf32>
      %cst_12 = arith.constant 0.000000e+00 : f32
      %18 = vector.broadcast %cst_12 : f32 to vector<8x128xf32>
      %19 = arith.subf %18, %17 : vector<8x128xf32>
      %20 = math.exp %19 : vector<8x128xf32>
      %cst_13 = arith.constant 1.000000e+00 : f32
      %21 = vector.broadcast %cst_13 : f32 to vector<8x128xf32>
      %22 = arith.addf %21, %20 : vector<8x128xf32>
      %cst_14 = arith.constant 1.000000e+00 : f32
      %23 = vector.broadcast %cst_14 : f32 to vector<8x128xf32>
      %24 = arith.divf %23, %22 : vector<8x128xf32>
      %cst_15 = arith.constant 0.000000e+00 : f32
      %25 = vector.broadcast %cst_15 : f32 to vector<8x128xf32>
      %26 = arith.cmpf oge, %16, %25 : vector<8x128xf32>
      %27 = arith.mulf %20, %24 : vector<8x128xf32>
      %28 = arith.select %26, %24, %27 : vector<8x128xi1>, vector<8x128xf32>
      %c0_16 = arith.constant 0 : index
      %c0_17 = arith.constant 0 : index
      %29 = vector.load %arg5[%c0_16, %c0_17] : memref<8x128xf32, #tpu.memory_space<vmem>>, vector<8x128xf32>
      tpu.vector_store %arg5[%c0_16, %c0_17], %28 {strides = array<i32>} : memref<8x128xf32, #tpu.memory_space<vmem>>, vector<8x128xf32>,
    } else {
    }
    return
  }
  func.func @transform_0(%arg0: i32, %arg1: i32) -> (i32, i32) {
    %c0_i32 = arith.constant 0 : i32
    return %arg0, %arg1 : i32, i32
  }
  func.func @transform_1(%arg0: i32, %arg1: i32) -> (i32, i32) {
    %c0_i32 = arith.constant 0 : i32
    %c0_i32_0 = arith.constant 0 : i32
    return %arg1, %c0_i32 : i32, i32
  }
  func.func @transform_2(%arg0: i32, %arg1: i32) -> (i32, i32) {
    %c0_i32 = arith.constant 0 : i32
    %c0_i32_0 = arith.constant 0 : i32
    %c0_i32_1 = arith.constant 0 : i32
    return %c0_i32, %c0_i32_0 : i32, i32
  }
  func.func @transform_3(%arg0: i32, %arg1: i32) -> (i32, i32) {
    %c0_i32 = arith.constant 0 : i32
    %c0_i32_0 = arith.constant 0 : i32
    return %arg0, %c0_i32 : i32, i32
  }
}

</mosaic_0001>

<llo_original>
// kernel: logreg_forward.1
$region0: #{logreg_forward.1}
  #allocation0 [shape = 'u32[]', space=smem, size = 0x4, offset = 0x4, fixed_abs, tag = 'smem constant byte address 0x4 - core index']
  #allocation1 [shape = 'u32[144,128]{1,0:T(1,128)}', space=vmem, size = 0x12000, scoped, tag = 'internal scratch']
  %s0 = inlined_call_operand.vmem [shape: f32[8,1024], index: 0, kind: input, shape index: {}]
  %s1 = inlined_call_operand.vmem [shape: bf16[1024,128], index: 1, kind: input, shape index: {}]
  %s2 = inlined_call_operand.vmem [shape: f32[1,128], index: 2, kind: input, shape index: {}]
  %s3 = inlined_call_operand.hbm [shape: f32[8,128], index: 3, kind: output, shape index: {}]
  %s4 = sld [smem:[#allocation0]]
  $region34: #{logreg_forward.1} parent=0
    _
  %s6 = ssub.s32 1, %s4
  %s7 = scalar_select 0, %s6, %s4
  $region1: #{logreg_forward.1} parent=0
    #allocation2 [shape = 'u8[4096]{0}', space=vmem, size = 0x1000, scoped, tag = 'output window, operand 0, single buffered']
    #allocation3 [shape = 's32[1]{0}', space=sflag, size = 0x4, scoped, tag = 'scoped memory for logreg_forward.1']
    %8 = vsyncpa [#allocation3], 0
    // Predicated region
    $region2: #{logreg_forward.1} parent=1 // pred_check
      _
    $region3: #{logreg_forward.1} parent=1 // pred_check_branch
      %10 = sbr.rel (0) target = $region5
    $region4: #{logreg_forward.1} parent=1 // pred_region
      _
    $region5: #{logreg_forward.1} parent=1 // pred_fallthru
      _
    // Predicated region
    $region6: #{logreg_forward.1} parent=1 // pred_check
      _
    $region7: #{logreg_forward.1} parent=1 // pred_check_branch
      %12 = sbr.rel (0) target = $region9
    $region8: #{logreg_forward.1} parent=1 // pred_region
      _
    $region9: #{logreg_forward.1} parent=1 // pred_fallthru
      _
    // Predicated region
    $region10: #{logreg_forward.1} parent=1 // pred_check
      _
    $region11: #{logreg_forward.1} parent=1 // pred_check_branch
      %14 = sbr.rel (0) target = $region13
    $region12: #{logreg_forward.1} parent=1 // pred_region
      _
    $region13: #{logreg_forward.1} parent=1 // pred_fallthru
      _
    %v16 = vld [vmem:[%s1] sm:$0xf]
    %v17 = vld [vmem:[%s1 + $0x4] sm:$0xf]
    %v18 = vld [vmem:[%s1 + $0x8] sm:$0xf]
    %v19 = vld [vmem:[%s1 + $0xc] sm:$0xf]
    %v20 = vld [vmem:[%s1 + $0x10] sm:$0xf]
    %v21 = vld [vmem:[%s1 + $0x14] sm:$0xf]
    %v22 = vld [vmem:[%s1 + $0x18] sm:$0xf]
    %v23 = vld [vmem:[%s1 + $0x1c] sm:$0xf]
    %v24 = vld [vmem:[%s1 + $0x20] sm:$0xf]
    %v25 = vld [vmem:[%s1 + $0x24] sm:$0xf]
    %v26 = vld [vmem:[%s1 + $0x28] sm:$0xf]
    %v27 = vld [vmem:[%s1 + $0x2c] sm:$0xf]
    %v28 = vld [vmem:[%s1 + $0x30] sm:$0xf]
    %v29 = vld [vmem:[%s1 + $0x34] sm:$0xf]
    %v30 = vld [vmem:[%s1 + $0x38] sm:$0xf]
    %v31 = vld [vmem:[%s1 + $0x3c] sm:$0xf]
    %v32 = vld [vmem:[%s1 + $0x40] sm:$0xf]
    %v33 = vld [vmem:[%s1 + $0x44] sm:$0xf]
    %v34 = vld [vmem:[%s1 + $0x48] sm:$0xf]
    %v35 = vld [vmem:[%s1 + $0x4c] sm:$0xf]
    %v36 = vld [vmem:[%s1 + $0x50] sm:$0xf]
    %v37 = vld [vmem:[%s1 + $0x54] sm:$0xf]
    %v38 = vld [vmem:[%s1 + $0x58] sm:$0xf]
    %v39 = vld [vmem:[%s1 + $0x5c] sm:$0xf]
    %v40 = vld [vmem:[%s1 + $0x60] sm:$0xf]
    %v41 = vld [vmem:[%s1 + $0x64] sm:$0xf]
    %v42 = vld [vmem:[%s1 + $0x68] sm:$0xf]
    %v43 = vld [vmem:[%s1 + $0x6c] sm:$0xf]
    %v44 = vld [vmem:[%s1 + $0x70] sm:$0xf]
    %v45 = vld [vmem:[%s1 + $0x74] sm:$0xf]
    %v46 = vld [vmem:[%s1 + $0x78] sm:$0xf]
    %v47 = vld [vmem:[%s1 + $0x7c] sm:$0xf]
    %v48 = vld [vmem:[%s1 + $0x80] sm:$0xf]
    %v49 = vld [vmem:[%s1 + $0x84] sm:$0xf]
    %v50 = vld [vmem:[%s1 + $0x88] sm:$0xf]
    %v51 = vld [vmem:[%s1 + $0x8c] sm:$0xf]
    %v52 = vld [vmem:[%s1 + $0x90] sm:$0xf]
    %v53 = vld [vmem:[%s1 + $0x94] sm:$0xf]
    %v54 = vld [vmem:[%s1 + $0x98] sm:$0xf]
    %v55 = vld [vmem:[%s1 + $0x9c] sm:$0xf]
    %v56 = vld [vmem:[%s1 + $0xa0] sm:$0xf]
    %v57 = vld [vmem:[%s1 + $0xa4] sm:$0xf]
    %v58 = vld [vmem:[%s1 + $0xa8] sm:$0xf]
    %v59 = vld [vmem:[%s1 + $0xac] sm:$0xf]
    %v60 = vld [vmem:[%s1 + $0xb0] sm:$0xf]
    %v61 = vld [vmem:[%s1 + $0xb4] sm:$0xf]
    %v62 = vld [vmem:[%s1 + $0xb8] sm:$0xf]
    %v63 = vld [vmem:[%s1 + $0xbc] sm:$0xf]
    %v64 = vld [vmem:[%s1 + $0xc0] sm:$0xf]
    %v65 = vld [vmem:[%s1 + $0xc4] sm:$0xf]
    %v66 = vld [vmem:[%s1 + $0xc8] sm:$0xf]
    %v67 = vld [vmem:[%s1 + $0xcc] sm:$0xf]
    %v68 = vld [vmem:[%s1 + $0xd0] sm:$0xf]
    %v69 = vld [vmem:[%s1 + $0xd4] sm:$0xf]
    %v70 = vld [vmem:[%s1 + $0xd8] sm:$0xf]
    %v71 = vld [vmem:[%s1 + $0xdc] sm:$0xf]
    %v72 = vld [vmem:[%s1 + $0xe0] sm:$0xf]
    %v73 = vld [vmem:[%s1 + $0xe4] sm:$0xf]
    %v74 = vld [vmem:[%s1 + $0xe8] sm:$0xf]
    %v75 = vld [vmem:[%s1 + $0xec] sm:$0xf]
    %v76 = vld [vmem:[%s1 + $0xf0] sm:$0xf]
    %v77 = vld [vmem:[%s1 + $0xf4] sm:$0xf]
    %v78 = vld [vmem:[%s1 + $0xf8] sm:$0xf]
    %v79 = vld [vmem:[%s1 + $0xfc] sm:$0xf]
    %v80 = vld [vmem:[%s1 + $0x100] sm:$0xf]
    %v81 = vld [vmem:[%s1 + $0x104] sm:$0xf]
    %v82 = vld [vmem:[%s1 + $0x108] sm:$0xf]
    %v83 = vld [vmem:[%s1 + $0x10c] sm:$0xf]
    %v84 = vld [vmem:[%s1 + $0x110] sm:$0xf]
    %v85 = vld [vmem:[%s1 + $0x114] sm:$0xf]
    %v86 = vld [vmem:[%s1 + $0x118] sm:$0xf]
    %v87 = vld [vmem:[%s1 + $0x11c] sm:$0xf]
    %v88 = vld [vmem:[%s1 + $0x120] sm:$0xf]
    %v89 = vld [vmem:[%s1 + $0x124] sm:$0xf]
    %v90 = vld [vmem:[%s1 + $0x128] sm:$0xf]
    %v91 = vld [vmem:[%s1 + $0x12c] sm:$0xf]
    %v92 = vld [vmem:[%s1 + $0x130] sm:$0xf]
    %v93 = vld [vmem:[%s1 + $0x134] sm:$0xf]
    %v94 = vld [vmem:[%s1 + $0x138] sm:$0xf]
    %v95 = vld [vmem:[%s1 + $0x13c] sm:$0xf]
    %v96 = vld [vmem:[%s1 + $0x140] sm:$0xf]
    %v97 = vld [vmem:[%s1 + $0x144] sm:$0xf]
    %v98 = vld [vmem:[%s1 + $0x148] sm:$0xf]
    %v99 = vld [vmem:[%s1 + $0x14c] sm:$0xf]
    %v100 = vld [vmem:[%s1 + $0x150] sm:$0xf]
    %v101 = vld [vmem:[%s1 + $0x154] sm:$0xf]
    %v102 = vld [vmem:[%s1 + $0x158] sm:$0xf]
    %v103 = vld [vmem:[%s1 + $0x15c] sm:$0xf]
    %v104 = vld [vmem:[%s1 + $0x160] sm:$0xf]
    %v105 = vld [vmem:[%s1 + $0x164] sm:$0xf]
    %v106 = vld [vmem:[%s1 + $0x168] sm:$0xf]
    %v107 = vld [vmem:[%s1 + $0x16c] sm:$0xf]
    %v108 = vld [vmem:[%s1 + $0x170] sm:$0xf]
    %v109 = vld [vmem:[%s1 + $0x174] sm:$0xf]
    %v110 = vld [vmem:[%s1 + $0x178] sm:$0xf]
    %v111 = vld [vmem:[%s1 + $0x17c] sm:$0xf]
    %v112 = vld [vmem:[%s1 + $0x180] sm:$0xf]
    %v113 = vld [vmem:[%s1 + $0x184] sm:$0xf]
    %v114 = vld [vmem:[%s1 + $0x188] sm:$0xf]
    %v115 = vld [vmem:[%s1 + $0x18c] sm:$0xf]
    %v116 = vld [vmem:[%s1 + $0x190] sm:$0xf]
    %v117 = vld [vmem:[%s1 + $0x194] sm:$0xf]
    %v118 = vld [vmem:[%s1 + $0x198] sm:$0xf]
    %v119 = vld [vmem:[%s1 + $0x19c] sm:$0xf]
    %v120 = vld [vmem:[%s1 + $0x1a0] sm:$0xf]
    %v121 = vld [vmem:[%s1 + $0x1a4] sm:$0xf]
    %v122 = vld [vmem:[%s1 + $0x1a8] sm:$0xf]
    %v123 = vld [vmem:[%s1 + $0x1ac] sm:$0xf]
    %v124 = vld [vmem:[%s1 + $0x1b0] sm:$0xf]
    %v125 = vld [vmem:[%s1 + $0x1b4] sm:$0xf]
    %v126 = vld [vmem:[%s1 + $0x1b8] sm:$0xf]
    %v127 = vld [vmem:[%s1 + $0x1bc] sm:$0xf]
    %v128 = vld [vmem:[%s1 + $0x1c0] sm:$0xf]
    %v129 = vld [vmem:[%s1 + $0x1c4] sm:$0xf]
    %v130 = vld [vmem:[%s1 + $0x1c8] sm:$0xf]
    %v131 = vld [vmem:[%s1 + $0x1cc] sm:$0xf]
    %v132 = vld [vmem:[%s1 + $0x1d0] sm:$0xf]
    %v133 = vld [vmem:[%s1 + $0x1d4] sm:$0xf]
    %v134 = vld [vmem:[%s1 + $0x1d8] sm:$0xf]
    %v135 = vld [vmem:[%s1 + $0x1dc] sm:$0xf]
    %v136 = vld [vmem:[%s1 + $0x1e0] sm:$0xf]
    %v137 = vld [vmem:[%s1 + $0x1e4] sm:$0xf]
    %v138 = vld [vmem:[%s1 + $0x1e8] sm:$0xf]
    %v139 = vld [vmem:[%s1 + $0x1ec] sm:$0xf]
    %v140 = vld [vmem:[%s1 + $0x1f0] sm:$0xf]
    %v141 = vld [vmem:[%s1 + $0x1f4] sm:$0xf]
    %v142 = vld [vmem:[%s1 + $0x1f8] sm:$0xf]
    %v143 = vld [vmem:[%s1 + $0x1fc] sm:$0xf]
    %v144 = vld [vmem:[%s0] sm:$0xff]
    %v145 = vld [vmem:[%s0 + $0x8] sm:$0xff]
    %v146 = vld [vmem:[%s0 + $0x10] sm:$0xff]
    %v147 = vld [vmem:[%s0 + $0x18] sm:$0xff]
    %v148 = vld [vmem:[%s0 + $0x20] sm:$0xff]
    %v149 = vld [vmem:[%s0 + $0x28] sm:$0xff]
    %v150 = vld [vmem:[%s0 + $0x30] sm:$0xff]
    %v151 = vld [vmem:[%s0 + $0x38] sm:$0xff]
    %v152 = vpack.c.bf16 %v144, %v144
    %v153 = vpack.c.bf16 %v145, %v145
    %v154 = vpack.c.bf16 %v146, %v146
    %v155 = vpack.c.bf16 %v147, %v147
    %v156 = vpack.c.bf16 %v148, %v148
    %v157 = vpack.c.bf16 %v149, %v149
    %v158 = vpack.c.bf16 %v150, %v150
    %v159 = vpack.c.bf16 %v151, %v151
    %v288 = vunpack.c.l.b16 %v16
    %v289 = vunpack.c.l.b16 %v17
    %v290 = vunpack.c.l.b16 %v18
    %v291 = vunpack.c.l.b16 %v19
    %v292 = vunpack.c.l.b16 %v20
    %v293 = vunpack.c.l.b16 %v21
    %v294 = vunpack.c.l.b16 %v22
    %v295 = vunpack.c.l.b16 %v23
    %v296 = vunpack.c.l.b16 %v24
    %v297 = vunpack.c.l.b16 %v25
    %v298 = vunpack.c.l.b16 %v26
    %v299 = vunpack.c.l.b16 %v27
    %v300 = vunpack.c.l.b16 %v28
    %v301 = vunpack.c.l.b16 %v29
    %v302 = vunpack.c.l.b16 %v30
    %v303 = vunpack.c.l.b16 %v31
    %v304 = vunpack.c.l.b16 %v32
    %v305 = vunpack.c.l.b16 %v33
    %v306 = vunpack.c.l.b16 %v34
    %v307 = vunpack.c.l.b16 %v35
    %v308 = vunpack.c.l.b16 %v36
    %v309 = vunpack.c.l.b16 %v37
    %v310 = vunpack.c.l.b16 %v38
    %v311 = vunpack.c.l.b16 %v39
    %v312 = vunpack.c.l.b16 %v40
    %v313 = vunpack.c.l.b16 %v41
    %v314 = vunpack.c.l.b16 %v42
    %v315 = vunpack.c.l.b16 %v43
    %v316 = vunpack.c.l.b16 %v44
    %v317 = vunpack.c.l.b16 %v45
    %v318 = vunpack.c.l.b16 %v46
    %v319 = vunpack.c.l.b16 %v47
    %v320 = vunpack.c.l.b16 %v48
    %v321 = vunpack.c.l.b16 %v49
    %v322 = vunpack.c.l.b16 %v50
    %v323 = vunpack.c.l.b16 %v51
    %v324 = vunpack.c.l.b16 %v52
    %v325 = vunpack.c.l.b16 %v53
    %v326 = vunpack.c.l.b16 %v54
    %v327 = vunpack.c.l.b16 %v55
    %v328 = vunpack.c.l.b16 %v56
    %v329 = vunpack.c.l.b16 %v57
    %v330 = vunpack.c.l.b16 %v58
    %v331 = vunpack.c.l.b16 %v59
    %v332 = vunpack.c.l.b16 %v60
    %v333 = vunpack.c.l.b16 %v61
    %v334 = vunpack.c.l.b16 %v62
    %v335 = vunpack.c.l.b16 %v63
    %v336 = vunpack.c.l.b16 %v64
    %v337 = vunpack.c.l.b16 %v65
    %v338 = vunpack.c.l.b16 %v66
    %v339 = vunpack.c.l.b16 %v67
    %v340 = vunpack.c.l.b16 %v68
    %v341 = vunpack.c.l.b16 %v69
    %v342 = vunpack.c.l.b16 %v70
    %v343 = vunpack.c.l.b16 %v71
    %v344 = vunpack.c.l.b16 %v72
    %v345 = vunpack.c.l.b16 %v73
    %v346 = vunpack.c.l.b16 %v74
    %v347 = vunpack.c.l.b16 %v75
    %v348 = vunpack.c.l.b16 %v76
    %v349 = vunpack.c.l.b16 %v77
    %v350 = vunpack.c.l.b16 %v78
    %v351 = vunpack.c.l.b16 %v79
    %v352 = vunpack.c.l.b16 %v80
    %v353 = vunpack.c.l.b16 %v81
    %v354 = vunpack.c.l.b16 %v82
    %v355 = vunpack.c.l.b16 %v83
    %v356 = vunpack.c.l.b16 %v84
    %v357 = vunpack.c.l.b16 %v85
    %v358 = vunpack.c.l.b16 %v86
    %v359 = vunpack.c.l.b16 %v87
    %v360 = vunpack.c.l.b16 %v88
    %v361 = vunpack.c.l.b16 %v89
    %v362 = vunpack.c.l.b16 %v90
    %v363 = vunpack.c.l.b16 %v91
    %v364 = vunpack.c.l.b16 %v92
    %v365 = vunpack.c.l.b16 %v93
    %v366 = vunpack.c.l.b16 %v94
    %v367 = vunpack.c.l.b16 %v95
    %v368 = vunpack.c.l.b16 %v96
    %v369 = vunpack.c.l.b16 %v97
    %v370 = vunpack.c.l.b16 %v98
    %v371 = vunpack.c.l.b16 %v99
    %v372 = vunpack.c.l.b16 %v100
    %v373 = vunpack.c.l.b16 %v101
    %v374 = vunpack.c.l.b16 %v102
    %v375 = vunpack.c.l.b16 %v103
    %v376 = vunpack.c.l.b16 %v104
    %v377 = vunpack.c.l.b16 %v105
    %v378 = vunpack.c.l.b16 %v106
    %v379 = vunpack.c.l.b16 %v107
    %v380 = vunpack.c.l.b16 %v108
    %v381 = vunpack.c.l.b16 %v109
    %v382 = vunpack.c.l.b16 %v110
    %v383 = vunpack.c.l.b16 %v111
    %v384 = vunpack.c.l.b16 %v112
    %v385 = vunpack.c.l.b16 %v113
    %v386 = vunpack.c.l.b16 %v114
    %v387 = vunpack.c.l.b16 %v115
    %v388 = vunpack.c.l.b16 %v116
    %v389 = vunpack.c.l.b16 %v117
    %v390 = vunpack.c.l.b16 %v118
    %v391 = vunpack.c.l.b16 %v119
    %v392 = vunpack.c.l.b16 %v120
    %v393 = vunpack.c.l.b16 %v121
    %v394 = vunpack.c.l.b16 %v122
    %v395 = vunpack.c.l.b16 %v123
    %v396 = vunpack.c.l.b16 %v124
    %v397 = vunpack.c.l.b16 %v125
    %v398 = vunpack.c.l.b16 %v126
    %v399 = vunpack.c.l.b16 %v127
    %v400 = vunpack.c.l.b16 %v128
    %v401 = vunpack.c.l.b16 %v129
    %v402 = vunpack.c.l.b16 %v130
    %v403 = vunpack.c.l.b16 %v131
    %v404 = vunpack.c.l.b16 %v132
    %v405 = vunpack.c.l.b16 %v133
    %v406 = vunpack.c.l.b16 %v134
    %v407 = vunpack.c.l.b16 %v135
    %v408 = vunpack.c.l.b16 %v136
    %v409 = vunpack.c.l.b16 %v137
    %v410 = vunpack.c.l.b16 %v138
    %v411 = vunpack.c.l.b16 %v139
    %v412 = vunpack.c.l.b16 %v140
    %v413 = vunpack.c.l.b16 %v141
    %v414 = vunpack.c.l.b16 %v142
    %v415 = vunpack.c.l.b16 %v143
    %v416 = vpack.c.b16 %v289, %v288
    %v417 = vpack.c.b16 %v291, %v290
    %v418 = vpack.c.b16 %v293, %v292
    %v419 = vpack.c.b16 %v295, %v294
    %v420 = vpack.c.b16 %v297, %v296
    %v421 = vpack.c.b16 %v299, %v298
    %v422 = vpack.c.b16 %v301, %v300
    %v423 = vpack.c.b16 %v303, %v302
    %v424 = vpack.c.b16 %v305, %v304
    %v425 = vpack.c.b16 %v307, %v306
    %v426 = vpack.c.b16 %v309, %v308
    %v427 = vpack.c.b16 %v311, %v310
    %v428 = vpack.c.b16 %v313, %v312
    %v429 = vpack.c.b16 %v315, %v314
    %v430 = vpack.c.b16 %v317, %v316
    %v431 = vpack.c.b16 %v319, %v318
    %v432 = vpack.c.b16 %v321, %v320
    %v433 = vpack.c.b16 %v323, %v322
    %v434 = vpack.c.b16 %v325, %v324
    %v435 = vpack.c.b16 %v327, %v326
    %v436 = vpack.c.b16 %v329, %v328
    %v437 = vpack.c.b16 %v331, %v330
    %v438 = vpack.c.b16 %v333, %v332
    %v439 = vpack.c.b16 %v335, %v334
    %v440 = vpack.c.b16 %v337, %v336
    %v441 = vpack.c.b16 %v339, %v338
    %v442 = vpack.c.b16 %v341, %v340
    %v443 = vpack.c.b16 %v343, %v342
    %v444 = vpack.c.b16 %v345, %v344
    %v445 = vpack.c.b16 %v347, %v346
    %v446 = vpack.c.b16 %v349, %v348
    %v447 = vpack.c.b16 %v351, %v350
    %v448 = vpack.c.b16 %v353, %v352
    %v449 = vpack.c.b16 %v355, %v354
    %v450 = vpack.c.b16 %v357, %v356
    %v451 = vpack.c.b16 %v359, %v358
    %v452 = vpack.c.b16 %v361, %v360
    %v453 = vpack.c.b16 %v363, %v362
    %v454 = vpack.c.b16 %v365, %v364
    %v455 = vpack.c.b16 %v367, %v366
    %v456 = vpack.c.b16 %v369, %v368
    %v457 = vpack.c.b16 %v371, %v370
    %v458 = vpack.c.b16 %v373, %v372
    %v459 = vpack.c.b16 %v375, %v374
    %v460 = vpack.c.b16 %v377, %v376
    %v461 = vpack.c.b16 %v379, %v378
    %v462 = vpack.c.b16 %v381, %v380
    %v463 = vpack.c.b16 %v383, %v382
    %v464 = vpack.c.b16 %v385, %v384
    %v465 = vpack.c.b16 %v387, %v386
    %v466 = vpack.c.b16 %v389, %v388
    %v467 = vpack.c.b16 %v391, %v390
    %v468 = vpack.c.b16 %v393, %v392
    %v469 = vpack.c.b16 %v395, %v394
    %v470 = vpack.c.b16 %v397, %v396
    %v471 = vpack.c.b16 %v399, %v398
    %v472 = vpack.c.b16 %v401, %v400
    %v473 = vpack.c.b16 %v403, %v402
    %v474 = vpack.c.b16 %v405, %v404
    %v475 = vpack.c.b16 %v407, %v406
    %v476 = vpack.c.b16 %v409, %v408
    %v477 = vpack.c.b16 %v411, %v410
    %v478 = vpack.c.b16 %v413, %v412
    %v479 = vpack.c.b16 %v415, %v414
    %544 = vmatprep.subr.bf16.mxu0 0
    %545 = vmatpush1.bf16.msra.mxu0 %v423
    %546 = vmatprep.subr.bf16.mxu0 0
    %547 = vmatpush1.bf16.msra.mxu0 %v422
    %548 = vmatprep.subr.bf16.mxu0 0
    %549 = vmatpush1.bf16.msra.mxu0 %v421
    %550 = vmatprep.subr.bf16.mxu0 0
    %551 = vmatpush1.bf16.msra.mxu0 %v420
    %552 = vmatprep.subr.bf16.mxu0 0
    %553 = vmatpush1.bf16.msra.mxu0 %v419
    %554 = vmatprep.subr.bf16.mxu0 0
    %555 = vmatpush1.bf16.msra.mxu0 %v418
    %556 = vmatprep.subr.bf16.mxu0 0
    %557 = vmatpush1.bf16.msra.mxu0 %v417
    %558 = vmatprep.subr.bf16.mxu0 0
    %559 = vmatpush1.bf16.msra.mxu0 %v416
    %560 = vmatprep.subr.bf16.mxu0 0
    %561 = vmatpush2.bf16.msra.mxu0 %v431
    %562 = vmatprep.subr.bf16.mxu0 0
    %563 = vmatpush2.bf16.msra.mxu0 %v430
    %564 = vmatprep.subr.bf16.mxu0 0
    %565 = vmatpush2.bf16.msra.mxu0 %v429
    %566 = vmatprep.subr.bf16.mxu0 0
    %567 = vmatpush2.bf16.msra.mxu0 %v428
    %568 = vmatprep.subr.bf16.mxu0 0
    %569 = vmatpush2.bf16.msra.mxu0 %v427
    %570 = vmatprep.subr.bf16.mxu0 0
    %571 = vmatpush2.bf16.msra.mxu0 %v426
    %572 = vmatprep.subr.bf16.mxu0 0
    %573 = vmatpush2.bf16.msra.mxu0 %v425
    %574 = vmatprep.subr.bf16.mxu0 0
    %575 = vmatpush2.bf16.msra.mxu0 %v424
    %576 = vmatprep.mubr.bf16.mxu0 %v153
    %577 = vmatmul.mubr.bf16.gmra.mxu0 %v152
    %v578 = vpop.f32.mrf.mxu0
    %v579 = vadd.f32 0.0, %v578
    %v580 = vpop.f32.mrf.mxu0
    %v581 = vpop.f32.mrf.mxu0
    %v582 = vpop.f32.mrf.mxu0
    %583 = vdwg.mxu0
    %584 = vmatprep.subr.bf16.mxu0 0
    %585 = vmatpush1.bf16.msra.mxu0 %v439
    %586 = vmatprep.subr.bf16.mxu0 0
    %587 = vmatpush1.bf16.msra.mxu0 %v438
    %588 = vmatprep.subr.bf16.mxu0 0
    %589 = vmatpush1.bf16.msra.mxu0 %v437
    %590 = vmatprep.subr.bf16.mxu0 0
    %591 = vmatpush1.bf16.msra.mxu0 %v436
    %592 = vmatprep.subr.bf16.mxu0 0
    %593 = vmatpush1.bf16.msra.mxu0 %v435
    %594 = vmatprep.subr.bf16.mxu0 0
    %595 = vmatpush1.bf16.msra.mxu0 %v434
    %596 = vmatprep.subr.bf16.mxu0 0
    %597 = vmatpush1.bf16.msra.mxu0 %v433
    %598 = vmatprep.subr.bf16.mxu0 0
    %599 = vmatpush1.bf16.msra.mxu0 %v432
    %600 = vmatprep.subr.bf16.mxu0 0
    %601 = vmatpush2.bf16.msra.mxu0 %v447
    %602 = vmatprep.subr.bf16.mxu0 0
    %603 = vmatpush2.bf16.msra.mxu0 %v446
    %604 = vmatprep.subr.bf16.mxu0 0
    %605 = vmatpush2.bf16.msra.mxu0 %v445
    %606 = vmatprep.subr.bf16.mxu0 0
    %607 = vmatpush2.bf16.msra.mxu0 %v444
    %608 = vmatprep.subr.bf16.mxu0 0
    %609 = vmatpush2.bf16.msra.mxu0 %v443
    %610 = vmatprep.subr.bf16.mxu0 0
    %611 = vmatpush2.bf16.msra.mxu0 %v442
    %612 = vmatprep.subr.bf16.mxu0 0
    %613 = vmatpush2.bf16.msra.mxu0 %v441
    %614 = vmatprep.subr.bf16.mxu0 0
    %615 = vmatpush2.bf16.msra.mxu0 %v440
    %616 = vmatprep.mubr.bf16.mxu0 %v155
    %617 = vmatmul.mubr.bf16.gmra.mxu0 %v154
    %v618 = vpop.f32.mrf.mxu0
    %v619 = vadd.f32 %v579, %v618
    %v620 = vpop.f32.mrf.mxu0
    %v621 = vpop.f32.mrf.mxu0
    %v622 = vpop.f32.mrf.mxu0
    %623 = vdwg.mxu0
    %624 = vmatprep.subr.bf16.mxu0 0
    %625 = vmatpush1.bf16.msra.mxu0 %v455
    %626 = vmatprep.subr.bf16.mxu0 0
    %627 = vmatpush1.bf16.msra.mxu0 %v454
    %628 = vmatprep.subr.bf16.mxu0 0
    %629 = vmatpush1.bf16.msra.mxu0 %v453
    %630 = vmatprep.subr.bf16.mxu0 0
    %631 = vmatpush1.bf16.msra.mxu0 %v452
    %632 = vmatprep.subr.bf16.mxu0 0
    %633 = vmatpush1.bf16.msra.mxu0 %v451
    %634 = vmatprep.subr.bf16.mxu0 0
    %635 = vmatpush1.bf16.msra.mxu0 %v450
    %636 = vmatprep.subr.bf16.mxu0 0
    %637 = vmatpush1.bf16.msra.mxu0 %v449
    %638 = vmatprep.subr.bf16.mxu0 0
    %639 = vmatpush1.bf16.msra.mxu0 %v448
    %640 = vmatprep.subr.bf16.mxu0 0
    %641 = vmatpush2.bf16.msra.mxu0 %v463
    %642 = vmatprep.subr.bf16.mxu0 0
    %643 = vmatpush2.bf16.msra.mxu0 %v462
    %644 = vmatprep.subr.bf16.mxu0 0
    %645 = vmatpush2.bf16.msra.mxu0 %v461
    %646 = vmatprep.subr.bf16.mxu0 0
    %647 = vmatpush2.bf16.msra.mxu0 %v460
    %648 = vmatprep.subr.bf16.mxu0 0
    %649 = vmatpush2.bf16.msra.mxu0 %v459
    %650 = vmatprep.subr.bf16.mxu0 0
    %651 = vmatpush2.bf16.msra.mxu0 %v458
    %652 = vmatprep.subr.bf16.mxu0 0
    %653 = vmatpush2.bf16.msra.mxu0 %v457
    %654 = vmatprep.subr.bf16.mxu0 0
    %655 = vmatpush2.bf16.msra.mxu0 %v456
    %656 = vmatprep.mubr.bf16.mxu0 %v157
    %657 = vmatmul.mubr.bf16.gmra.mxu0 %v156
    %v658 = vpop.f32.mrf.mxu0
    %v659 = vadd.f32 %v619, %v658
    %v660 = vpop.f32.mrf.mxu0
    %v661 = vpop.f32.mrf.mxu0
    %v662 = vpop.f32.mrf.mxu0
    %663 = vdwg.mxu0
    %664 = vmatprep.subr.bf16.mxu0 0
    %665 = vmatpush1.bf16.msra.mxu0 %v471
    %666 = vmatprep.subr.bf16.mxu0 0
    %667 = vmatpush1.bf16.msra.mxu0 %v470
    %668 = vmatprep.subr.bf16.mxu0 0
    %669 = vmatpush1.bf16.msra.mxu0 %v469
    %670 = vmatprep.subr.bf16.mxu0 0
    %671 = vmatpush1.bf16.msra.mxu0 %v468
    %672 = vmatprep.subr.bf16.mxu0 0
    %673 = vmatpush1.bf16.msra.mxu0 %v467
    %674 = vmatprep.subr.bf16.mxu0 0
    %675 = vmatpush1.bf16.msra.mxu0 %v466
    %676 = vmatprep.subr.bf16.mxu0 0
    %677 = vmatpush1.bf16.msra.mxu0 %v465
    %678 = vmatprep.subr.bf16.mxu0 0
    %679 = vmatpush1.bf16.msra.mxu0 %v464
    %680 = vmatprep.subr.bf16.mxu0 0
    %681 = vmatpush2.bf16.msra.mxu0 %v479
    %682 = vmatprep.subr.bf16.mxu0 0
    %683 = vmatpush2.bf16.msra.mxu0 %v478
    %684 = vmatprep.subr.bf16.mxu0 0
    %685 = vmatpush2.bf16.msra.mxu0 %v477
    %686 = vmatprep.subr.bf16.mxu0 0
    %687 = vmatpush2.bf16.msra.mxu0 %v476
    %688 = vmatprep.subr.bf16.mxu0 0
    %689 = vmatpush2.bf16.msra.mxu0 %v475
    %690 = vmatprep.subr.bf16.mxu0 0
    %691 = vmatpush2.bf16.msra.mxu0 %v474
    %692 = vmatprep.subr.bf16.mxu0 0
    %693 = vmatpush2.bf16.msra.mxu0 %v473
    %694 = vmatprep.subr.bf16.mxu0 0
    %695 = vmatpush2.bf16.msra.mxu0 %v472
    %696 = vmatprep.mubr.bf16.mxu0 %v159
    %697 = vmatmul.mubr.bf16.gmra.mxu0 %v158
    %v698 = vpop.f32.mrf.mxu0
    %v699 = vadd.f32 %v659, %v698
    %v700 = vpop.f32.mrf.mxu0
    %v701 = vpop.f32.mrf.mxu0
    %v702 = vpop.f32.mrf.mxu0
    %703 = vdwg.mxu0
    %p704 = scmp.eq.s32.totalorder 0, 0
    // Predicated region
    $region14: #{logreg_forward.1} parent=1 // pred_check
      %p705 = pneg %p704
    $region15: #{logreg_forward.1} parent=1 // pred_check_branch
      %707 = sbr.rel (%p705) target = $region17
    $region16: #{logreg_forward.1} parent=1 // pred_region
      %708 = vst [vmem:[#allocation2] sm:$0xff] %v699
    $region17: #{logreg_forward.1} parent=1 // pred_fallthru
      _
    %p709 = scmp.gt.s32.totalorder 0, 0
    // Predicated region
    $region18: #{logreg_forward.1} parent=1 // pred_check
      %p710 = pneg %p709
    $region19: #{logreg_forward.1} parent=1 // pred_check_branch
      %712 = sbr.rel (%p710) target = $region21
    $region20: #{logreg_forward.1} parent=1 // pred_region
      %v713 = vld [vmem:[#allocation2] sm:$0xff]
      %v714 = vadd.f32 %v713, %v699
      %715 = vst [vmem:[#allocation2] sm:$0xff] %v714
    $region21: #{logreg_forward.1} parent=1 // pred_fallthru
      _
    // Predicated region
    $region22: #{logreg_forward.1} parent=1 // pred_check
      %p716 = pneg %p704
    $region23: #{logreg_forward.1} parent=1 // pred_check_branch
      %718 = sbr.rel (%p716) target = $region25
    $region24: #{logreg_forward.1} parent=1 // pred_region
      %v719 = vld [vmem:[#allocation2] sm:$0xff]
      %v720 = vld [vmem:[%s2] sm:$0x1]
      %v722 = vlaneseq
      %v723 = vshrl.u32 %v722, 7
      %v724 = vsub.s32 0, %v723
      %v725 = vrot.slane %v720, %v724
      %v727 = vadd.f32 %v719, %v725
      %v728 = vand.u32 2147483647, %v727
      %v729 = vsub.f32 0.0, %v728
      %v730 = vmul.f32 %v729, 1.442695
      %v731 = vpow.pop %v730
      %v732 = vadd.f32 %v731, 1.0
      %v733 = vrcp.pop %v732
      %v734 = vmul.f32 1.0, %v733
      %vm735 = vcmp.ge.f32.partialorder %v727, 0.0
      %v736 = vmul.f32 %v731, %v734
      %v737 = vsel %vm735, %v734, %v736
      %738 = vst [vmem:[#allocation2] sm:$0xff] %v737
    $region25: #{logreg_forward.1} parent=1 // pred_fallthru
      _
    // Predicated region
    $region26: #{logreg_forward.1} parent=1 // pred_check
      _
    $region27: #{logreg_forward.1} parent=1 // pred_check_branch
      %740 = sbr.rel (0) target = $region29
    $region28: #{logreg_forward.1} parent=1 // pred_region
      %s742 = ssub.s32 128, 128
      %743 = vsyncadd [#allocation3], %s742
      %s745 = sshll.u32 [#allocation2], 4
      %s746 = int_to_ptr.vmem [resolvable:$true] %s745
      %748 = dma.vmem_to_hbm [thread:$0]  %s746, 128, %s3, [#allocation3]
    $region29: #{logreg_forward.1} parent=1 // pred_fallthru
      _
    // Predicated region
    $region30: #{logreg_forward.1} parent=1 // pred_check
      _
    $region31: #{logreg_forward.1} parent=1 // pred_check_branch
      %750 = sbr.rel (0) target = $region33
    $region32: #{logreg_forward.1} parent=1 // pred_region
      %751 = dma.done [#allocation3], 128
    $region33: #{logreg_forward.1} parent=1 // pred_fallthru
      _
    %752 = vsyncpa [#allocation3], 1

</llo_original>
